<compile_context>
chip_gen: v6e
topology: v6e:2x2x1
jax: 0.10.0
libtpu: 0.0.40
codegen_flags: <defaults>
</compile_context>

<pallas_src>
import functools

import jax
import jax.numpy as jnp
import numpy as np
from jax import lax
from jax.experimental import pallas as pl
from jax.experimental.pallas import tpu as pltpu

_LANES = 128
_SUBLANES = 8
_HBM_INFLIGHT = 16            # outstanding row DMAs in the HBM fallback
_ONEHOT_MAX_VOCAB = 2048      # one-hot MXU gather only for small vocabularies
_ONEHOT_BYTES_CAP = 1 << 20   # bound on the (T, vocab) one-hot intermediate


def _round_up(x, m):
    return ((x + m - 1) // m) * m


def _vmem_capacity_bytes():
    """Physical VMEM per TensorCore (64 MiB v7x, 128 MiB v5e/v6e)."""
    try:
        cap = getattr(pltpu.get_tpu_info(), "vmem_capacity_bytes", None)
        if cap:
            return int(cap)
    except Exception:
        pass
    return 64 * 1024 * 1024   # conservative default (v7x per-core VMEM)


# ----------------------- resident one-hot MXU gather ------------------------

def _onehot_gather_kernel(idx_ref, w_ref, o_ref):
    """out[t, :] = w[idx[t], :] via an exact one-hot matmul on the MXU.

    idx_ref : (T, 1) int32 block of token ids (VMEM, streamed per grid step)
    w_ref   : (Vp, Dp) zero-padded table, resident in VMEM (constant index map)
    o_ref   : (T, Dp) lane-dense output block
    """
    idx = idx_ref[...]                                      # (T, 1) int32
    t = idx.shape[0]
    vp = w_ref.shape[0]
    cols = lax.broadcasted_iota(jnp.int32, (t, vp), 1)      # (T, Vp)
    onehot = (idx == cols).astype(w_ref.dtype)              # exact 1.0 / 0.0
    acc = jnp.dot(onehot, w_ref[...], preferred_element_type=jnp.float32)
    o_ref[...] = acc.astype(o_ref.dtype)


# ---------------------- HBM fallback (table not in VMEM) --------------------

def _hbm_gather_kernel(idx_ref, w_hbm, o_ref, sems, *, tokens_per_block,
                       inflight):
    """Row gather from an HBM-resident table, DMA'd straight into o_ref."""
    T = tokens_per_block
    W = inflight
    base = pl.program_id(0) * T

    def issue(t, tok):
        pltpu.make_async_copy(w_hbm.at[pl.ds(tok, 1), :],
                              o_ref.at[pl.ds(t, 1), :],
                              sems.at[t % W]).start()

    def wait_row(t):
        # Same-sized descriptor; only the semaphore / byte count matter here.
        pltpu.make_async_copy(w_hbm.at[pl.ds(0, 1), :],
                              o_ref.at[pl.ds(t, 1), :],
                              sems.at[t % W]).wait()

    def prologue(t, c):
        issue(t, idx_ref[base + t])
        return c

    def steady(t, c):
        nxt = idx_ref[base + t + W]   # hoisted above wait: keep sst->sld fwd
        wait_row(t)
        issue(t + W, nxt)
        return c

    def epilogue(t, c):
        wait_row(t)
        return c

    lax.fori_loop(0, W, prologue, 0)
    lax.fori_loop(0, T - W, steady, 0)
    lax.fori_loop(T - W, T, epilogue, 0)


# --------------------------------- wrapper ----------------------------------

def poincare_equivalent_embedding(indices, weight, *, block_tokens=1024,
                                  path=None):
    """Pallas equivalent of nn.Embedding(indices): exact row lookup.

    indices: integer array of arbitrary shape
    weight : (num_embeddings, embedding_dim) table (any float dtype)
    returns: indices.shape + (embedding_dim,), dtype = weight.dtype
    """
    orig_shape = indices.shape
    num_emb, dim = weight.shape
    dtype = weight.dtype
    itemsize = jnp.dtype(dtype).itemsize

    flat = indices.reshape(-1).astype(jnp.int32)
    # nn.Embedding raises on out-of-range ids; Pallas gathers have no bounds
    # check, so clamp defensively (documented behavioral divergence).
    flat = jnp.clip(flat, 0, num_emb - 1)
    n = int(flat.shape[0])
    if n == 0:
        return jnp.zeros(orig_shape + (dim,), dtype)

    capacity = _vmem_capacity_bytes()
    budget = capacity - (8 << 20)

    # Padded geometry (what the kernel sees / what VMEM really holds).
    vp = _round_up(num_emb, _LANES)          # one-hot contraction dim
    dp = _round_up(dim, _LANES)              # lane-dense output rows
    sub = max(_SUBLANES, 32 // itemsize)     # sublane packing for this dtype

    # ----- one-hot path sizing -----
    width = max(vp, dp)
    t_cap = max(_LANES, (_ONEHOT_BYTES_CAP // (4 * width)) // _LANES * _LANES)
    t_oh = max(_LANES, min(_round_up(block_tokens, _LANES), t_cap,
                           _round_up(n, _LANES)))
    table_vmem = 2 * _round_up(vp, sub) * dp * itemsize      # double-buffered
    onehot_vmem = (table_vmem
                   + 2 * t_oh * _LANES * 4                   # (T,1) idx blocks
                   + 2 * t_oh * dp * itemsize                # output blocks
                   + t_oh * vp * itemsize + t_oh * dp * 4    # oh + f32 acc
                   + (2 << 20))

    if path is None:
        path = ("onehot" if (num_emb <= _ONEHOT_MAX_VOCAB
                             and onehot_vmem <= budget) else "hbm")

    if path == "onehot":
        T = t_oh
        n_pad = _round_up(n, T)
        flat_pad = jnp.pad(flat, (0, n_pad - n)).reshape(n_pad, 1)
        w_p = weight
        if vp != num_emb or dp != dim:
            w_p = jnp.pad(weight, ((0, vp - num_emb), (0, dp - dim)))
        vmem_limit = int(min(capacity, max(onehot_vmem + (4 << 20), 32 << 20)))
        out = pl.pallas_call(
            _onehot_gather_kernel,
            out_shape=jax.ShapeDtypeStruct((n_pad, dp), dtype),
            grid=(n_pad // T,),
            in_specs=[
                pl.BlockSpec((T, 1), lambda i: (i, 0)),      # token-id block
                pl.BlockSpec((vp, dp), lambda i: (0, 0)),    # resident table
            ],
            out_specs=pl.BlockSpec((T, dp), lambda i: (i, 0)),
            compiler_params=pltpu.CompilerParams(
                dimension_semantics=("parallel",),  # v7x: 2 TCs split blocks
                vmem_limit_bytes=vmem_limit,
            ),
        )(flat_pad, w_p)
        out = out[:n, :dim]
    elif path == "hbm":
        T = max(_LANES, min(_round_up(block_tokens, _LANES),
                            _round_up(n, _LANES)))
        n_pad = _round_up(n, T)
        flat_pad = jnp.pad(flat, (0, n_pad - n))
        W = min(_HBM_INFLIGHT, T)
        out_block = T * dim * itemsize
        vmem_limit = int(min(capacity,
                             max(4 * out_block + (16 << 20), 32 << 20)))
        kernel = functools.partial(_hbm_gather_kernel, tokens_per_block=T,
                                   inflight=W)
        out = pl.pallas_call(
            kernel,
            out_shape=jax.ShapeDtypeStruct((n_pad, dim), dtype),
            grid_spec=pltpu.PrefetchScalarGridSpec(
                num_scalar_prefetch=1,
                grid=(n_pad // T,),
                in_specs=[pl.BlockSpec(memory_space=pl.ANY)],  # table in HBM
                out_specs=pl.BlockSpec((T, dim), lambda i, idx: (i, 0)),
                scratch_shapes=[pltpu.SemaphoreType.DMA((W,))],
            ),
            compiler_params=pltpu.CompilerParams(
                dimension_semantics=("parallel",),
                vmem_limit_bytes=vmem_limit,
            ),
        )(flat_pad, weight)
        out = out[:n]
    else:
        raise ValueError(f"unknown path: {path}")

    return out.reshape(*orig_shape, dim)


def init_embedding_weight(key, num_embeddings, embedding_dim, padding_idx=None,
                          dtype=jnp.float32):
    """Deterministic init matching nn.Embedding: N(0,1), padding row zeroed."""
    w = jax.random.normal(key, (num_embeddings, embedding_dim), dtype=dtype)
    if padding_idx is not None:
        w = w.at[padding_idx].set(0.0)
    return w


def _check(indices, weight, rtol, atol, **kw):
    out = jax.block_until_ready(
        poincare_equivalent_embedding(indices, weight, **kw))
    ref = jnp.take(weight, indices, axis=0)
    np.testing.assert_allclose(np.asarray(out, dtype=np.float32),
                               np.asarray(ref, dtype=np.float32),
                               rtol=rtol, atol=atol)
    assert out.shape == indices.shape + (weight.shape[1],)
    assert out.dtype == weight.dtype
    return out


if __name__ == "__main__":
    key = jax.random.PRNGKey(0)
    k1, k2, k3, k4 = jax.random.split(key, 4)

    # Case 1: module-consistent small shapes (vocab=16, dim=32, padding_idx=0).
    num_embeddings, embedding_dim, padding_idx = 16, 32, 0
    batch, seq = 2, 8
    w1 = init_embedding_weight(k1, num_embeddings, embedding_dim, padding_idx)
    idx1 = jax.random.randint(k2, (batch, seq), 0, num_embeddings,
                              dtype=jnp.int32)
    idx1 = idx1.at[0, 0].set(padding_idx)          # ensure padding id appears
    out1 = _check(idx1, w1, rtol=1e-5, atol=1e-6)  # one-hot MXU path
    assert np.all(np.asarray(out1[0, 0]) == 0.0)   # padding row stays zero

    # Case 2: vocab=512, dim=128, multi-block grid with tail padding.
    w2 = init_embedding_weight(k3, 512, 128, padding_idx=None)
    idx2 = jax.random.randint(k4, (4, 200), 0, 512, dtype=jnp.int32)
    _check(idx2, w2, rtol=1e-5, atol=1e-6)         # one-hot MXU path

    # Case 3: exercise the HBM manual-DMA fallback (exact byte copy).
    _check(idx1, w1, rtol=0, atol=0, path="hbm")
    _check(idx2, w2, rtol=0, atol=0, path="hbm")

    print("KERNEL_OK")
</pallas_src>

<mosaic_0001>
module attributes {stable_mosaic.version = 11 : i64} {
  func.func @_onehot_gather_kernel(%arg0: i32, %arg1: memref<128x1xi32, #tpu.memory_space<vmem>>, %arg2: memref<128x128xf32, #tpu.memory_space<vmem>>, %arg3: memref<128x128xf32, #tpu.memory_space<vmem>>) attributes {dimension_semantics = [#tpu.dimension_semantics<parallel>], iteration_bounds = array<i64: 1>, scalar_prefetch = 0 : i64, scratch_operands = 0 : i64, tpu.core_type = #tpu.core_type<tc>, window_params = [{transform_indices = @transform_0, window_bounds = array<i64: 128, 1>}, {pipeline_mode = #tpu.pipeline_mode<synchronous>, transform_indices = @transform_1, window_bounds = array<i64: 128, 128>}, {transform_indices = @transform_2, window_bounds = array<i64: 128, 128>}]} {
    %c0 = arith.constant 0 : index
    %c0_0 = arith.constant 0 : index
    %0 = vector.load %arg1[%c0, %c0_0] : memref<128x1xi32, #tpu.memory_space<vmem>>, vector<128x1xi32>
    %1 = tpu.iota {dimensions = array<i32: 1>} : vector<128x128xi32>
    %2 = vector.broadcast %0 : vector<128x1xi32> to vector<128x128xi32>
    %3 = arith.cmpi eq, %2, %1 : vector<128x128xi32>
    %4 = arith.extui %3 : vector<128x128xi1> to vector<128x128xi32>
    %5 = arith.sitofp %4 : vector<128x128xi32> to vector<128x128xf32>
    %c0_1 = arith.constant 0 : index
    %c0_2 = arith.constant 0 : index
    %6 = vector.load %arg2[%c0_1, %c0_2] : memref<128x128xf32, #tpu.memory_space<vmem>>, vector<128x128xf32>
    %cst = arith.constant dense<0.000000e+00> : vector<128x128xf32>
    %7 = tpu.matmul %5, %6, %cst {dimension_numbers = #tpu.dot_dimension_numbers<[1], [0], [0], [1], [0, 0, 1, 1], [], []>} : vector<128x128xf32>, vector<128x128xf32>, vector<128x128xf32> -> vector<128x128xf32>
    %c0_3 = arith.constant 0 : index
    %c0_4 = arith.constant 0 : index
    %8 = vector.load %arg3[%c0_3, %c0_4] : memref<128x128xf32, #tpu.memory_space<vmem>>, vector<128x128xf32>
    tpu.vector_store %arg3[%c0_3, %c0_4], %7 {strides = array<i32>} : memref<128x128xf32, #tpu.memory_space<vmem>>, vector<128x128xf32>,
    return
  }
  func.func @transform_0(%arg0: i32) -> (i32, i32) {
    %c0_i32 = arith.constant 0 : i32
    %c0_i32_0 = arith.constant 0 : i32
    return %arg0, %c0_i32 : i32, i32
  }
  func.func @transform_1(%arg0: i32) -> (i32, i32) {
    %c0_i32 = arith.constant 0 : i32
    %c0_i32_0 = arith.constant 0 : i32
    %c0_i32_1 = arith.constant 0 : i32
    return %c0_i32, %c0_i32_0 : i32, i32
  }
  func.func @transform_2(%arg0: i32) -> (i32, i32) {
    %c0_i32 = arith.constant 0 : i32
    %c0_i32_0 = arith.constant 0 : i32
    return %arg0, %c0_i32 : i32, i32
  }
}

</mosaic_0001>

<llo_original>
// kernel: tpu_custom_call.1
$region0: #{tpu_custom_call.1}
  #allocation0 [shape = 'u32[]', space=smem, size = 0x4, offset = 0x4, fixed_abs, tag = 'smem constant byte address 0x4 - core index']
  #allocation1 [shape = 'u32[144,128]{1,0:T(1,128)}', space=vmem, size = 0x12000, scoped, tag = 'internal scratch']
  %s0 = inlined_call_operand.vmem [shape: s32[128,1], index: 0, kind: input, shape index: {}]
  %s1 = inlined_call_operand.vmem [shape: f32[128,128], index: 1, kind: input, shape index: {}]
  %s2 = inlined_call_operand.hbm [shape: f32[128,128], index: 2, kind: output, shape index: {}]
  %s3 = sld [smem:[#allocation0]]
  $region18: #{tpu_custom_call.1} parent=0
    _
  %s5 = ssub.s32 1, %s3
  %s6 = scalar_select 0, %s5, %s3
  $region1: #{tpu_custom_call.1} parent=0
    #allocation2 [shape = 'u8[65536]{0}', space=vmem, size = 0x10000, scoped, tag = 'output window, operand 0, single buffered']
    #allocation3 [shape = 's32[1]{0}', space=sflag, size = 0x4, scoped, tag = 'scoped memory for tpu_custom_call.1']
    %7 = vsyncpa [#allocation3], 0
    // Predicated region
    $region2: #{tpu_custom_call.1} parent=1 // pred_check
      _
    $region3: #{tpu_custom_call.1} parent=1 // pred_check_branch
      %9 = sbr.rel (0) target = $region5
    $region4: #{tpu_custom_call.1} parent=1 // pred_region
      _
    $region5: #{tpu_custom_call.1} parent=1 // pred_fallthru
      _
    // Predicated region
    $region6: #{tpu_custom_call.1} parent=1 // pred_check
      _
    $region7: #{tpu_custom_call.1} parent=1 // pred_check_branch
      %11 = sbr.rel (0) target = $region9
    $region8: #{tpu_custom_call.1} parent=1 // pred_region
      _
    $region9: #{tpu_custom_call.1} parent=1 // pred_fallthru
      _
    %v12 = vld [vmem:[%s0] sm:$0xff]
    %v13 = vld [vmem:[%s0 + $0x8] sm:$0xff]
    %v14 = vld [vmem:[%s0 + $0x10] sm:$0xff]
    %v15 = vld [vmem:[%s0 + $0x18] sm:$0xff]
    %v16 = vld [vmem:[%s0 + $0x20] sm:$0xff]
    %v17 = vld [vmem:[%s0 + $0x28] sm:$0xff]
    %v18 = vld [vmem:[%s0 + $0x30] sm:$0xff]
    %v19 = vld [vmem:[%s0 + $0x38] sm:$0xff]
    %v20 = vld [vmem:[%s0 + $0x40] sm:$0xff]
    %v21 = vld [vmem:[%s0 + $0x48] sm:$0xff]
    %v22 = vld [vmem:[%s0 + $0x50] sm:$0xff]
    %v23 = vld [vmem:[%s0 + $0x58] sm:$0xff]
    %v24 = vld [vmem:[%s0 + $0x60] sm:$0xff]
    %v25 = vld [vmem:[%s0 + $0x68] sm:$0xff]
    %v26 = vld [vmem:[%s0 + $0x70] sm:$0xff]
    %v27 = vld [vmem:[%s0 + $0x78] sm:$0xff]
    %v28 = vlaneseq
    %v29 = vand.u32 %v28, 127
    %30 = vset.pattern.permute.xlu0 0
    %31 = vperm.xlu0 %30, %v12
    %v32 = vpop.permute.xlu0 %31
    %33 = vset.pattern.permute.xlu0 0
    %34 = vperm.xlu0 %33, %v13
    %v35 = vpop.permute.xlu0 %34
    %36 = vset.pattern.permute.xlu0 0
    %37 = vperm.xlu0 %36, %v14
    %v38 = vpop.permute.xlu0 %37
    %39 = vset.pattern.permute.xlu0 0
    %40 = vperm.xlu0 %39, %v15
    %v41 = vpop.permute.xlu0 %40
    %42 = vset.pattern.permute.xlu0 0
    %43 = vperm.xlu0 %42, %v16
    %v44 = vpop.permute.xlu0 %43
    %45 = vset.pattern.permute.xlu0 0
    %46 = vperm.xlu0 %45, %v17
    %v47 = vpop.permute.xlu0 %46
    %48 = vset.pattern.permute.xlu0 0
    %49 = vperm.xlu0 %48, %v18
    %v50 = vpop.permute.xlu0 %49
    %51 = vset.pattern.permute.xlu0 0
    %52 = vperm.xlu0 %51, %v19
    %v53 = vpop.permute.xlu0 %52
    %54 = vset.pattern.permute.xlu0 0
    %55 = vperm.xlu0 %54, %v20
    %v56 = vpop.permute.xlu0 %55
    %57 = vset.pattern.permute.xlu0 0
    %58 = vperm.xlu0 %57, %v21
    %v59 = vpop.permute.xlu0 %58
    %60 = vset.pattern.permute.xlu0 0
    %61 = vperm.xlu0 %60, %v22
    %v62 = vpop.permute.xlu0 %61
    %63 = vset.pattern.permute.xlu0 0
    %64 = vperm.xlu0 %63, %v23
    %v65 = vpop.permute.xlu0 %64
    %66 = vset.pattern.permute.xlu0 0
    %67 = vperm.xlu0 %66, %v24
    %v68 = vpop.permute.xlu0 %67
    %69 = vset.pattern.permute.xlu0 0
    %70 = vperm.xlu0 %69, %v25
    %v71 = vpop.permute.xlu0 %70
    %72 = vset.pattern.permute.xlu0 0
    %73 = vperm.xlu0 %72, %v26
    %v74 = vpop.permute.xlu0 %73
    %75 = vset.pattern.permute.xlu0 0
    %76 = vperm.xlu0 %75, %v27
    %v77 = vpop.permute.xlu0 %76
    %vm78 = vcmp.eq.s32.totalorder %v32, %v29
    %vm79 = vcmp.eq.s32.totalorder %v35, %v29
    %vm80 = vcmp.eq.s32.totalorder %v38, %v29
    %vm81 = vcmp.eq.s32.totalorder %v41, %v29
    %vm82 = vcmp.eq.s32.totalorder %v44, %v29
    %vm83 = vcmp.eq.s32.totalorder %v47, %v29
    %vm84 = vcmp.eq.s32.totalorder %v50, %v29
    %vm85 = vcmp.eq.s32.totalorder %v53, %v29
    %vm86 = vcmp.eq.s32.totalorder %v56, %v29
    %vm87 = vcmp.eq.s32.totalorder %v59, %v29
    %vm88 = vcmp.eq.s32.totalorder %v62, %v29
    %vm89 = vcmp.eq.s32.totalorder %v65, %v29
    %vm90 = vcmp.eq.s32.totalorder %v68, %v29
    %vm91 = vcmp.eq.s32.totalorder %v71, %v29
    %vm92 = vcmp.eq.s32.totalorder %v74, %v29
    %vm93 = vcmp.eq.s32.totalorder %v77, %v29
    %v94 = vsel %vm78, 1, 0
    %v95 = vsel %vm79, 1, 0
    %v96 = vsel %vm80, 1, 0
    %v97 = vsel %vm81, 1, 0
    %v98 = vsel %vm82, 1, 0
    %v99 = vsel %vm83, 1, 0
    %v100 = vsel %vm84, 1, 0
    %v101 = vsel %vm85, 1, 0
    %v102 = vsel %vm86, 1, 0
    %v103 = vsel %vm87, 1, 0
    %v104 = vsel %vm88, 1, 0
    %v105 = vsel %vm89, 1, 0
    %v106 = vsel %vm90, 1, 0
    %v107 = vsel %vm91, 1, 0
    %v108 = vsel %vm92, 1, 0
    %v109 = vsel %vm93, 1, 0
    %v110 = vcvt.s32.f32 %v94
    %v111 = vcvt.s32.f32 %v95
    %v112 = vcvt.s32.f32 %v96
    %v113 = vcvt.s32.f32 %v97
    %v114 = vcvt.s32.f32 %v98
    %v115 = vcvt.s32.f32 %v99
    %v116 = vcvt.s32.f32 %v100
    %v117 = vcvt.s32.f32 %v101
    %v118 = vcvt.s32.f32 %v102
    %v119 = vcvt.s32.f32 %v103
    %v120 = vcvt.s32.f32 %v104
    %v121 = vcvt.s32.f32 %v105
    %v122 = vcvt.s32.f32 %v106
    %v123 = vcvt.s32.f32 %v107
    %v124 = vcvt.s32.f32 %v108
    %v125 = vcvt.s32.f32 %v109
    %v126 = vld [vmem:[%s1] sm:$0xff]
    %v127 = vld [vmem:[%s1 + $0x8] sm:$0xff]
    %v128 = vld [vmem:[%s1 + $0x10] sm:$0xff]
    %v129 = vld [vmem:[%s1 + $0x18] sm:$0xff]
    %v130 = vld [vmem:[%s1 + $0x20] sm:$0xff]
    %v131 = vld [vmem:[%s1 + $0x28] sm:$0xff]
    %v132 = vld [vmem:[%s1 + $0x30] sm:$0xff]
    %v133 = vld [vmem:[%s1 + $0x38] sm:$0xff]
    %v134 = vld [vmem:[%s1 + $0x40] sm:$0xff]
    %v135 = vld [vmem:[%s1 + $0x48] sm:$0xff]
    %v136 = vld [vmem:[%s1 + $0x50] sm:$0xff]
    %v137 = vld [vmem:[%s1 + $0x58] sm:$0xff]
    %v138 = vld [vmem:[%s1 + $0x60] sm:$0xff]
    %v139 = vld [vmem:[%s1 + $0x68] sm:$0xff]
    %v140 = vld [vmem:[%s1 + $0x70] sm:$0xff]
    %v141 = vld [vmem:[%s1 + $0x78] sm:$0xff]
    %142 = vmatprep.subr.mxu0 0.0
    %143 = vmatpush1.msra.mxu0 %v141
    %144 = vmatprep.subr.mxu0 0.0
    %145 = vmatpush1.msra.mxu0 %v140
    %146 = vmatprep.subr.mxu0 0.0
    %147 = vmatpush1.msra.mxu0 %v139
    %148 = vmatprep.subr.mxu0 0.0
    %149 = vmatpush1.msra.mxu0 %v138
    %150 = vmatprep.subr.mxu0 0.0
    %151 = vmatpush1.msra.mxu0 %v137
    %152 = vmatprep.subr.mxu0 0.0
    %153 = vmatpush1.msra.mxu0 %v136
    %154 = vmatprep.subr.mxu0 0.0
    %155 = vmatpush1.msra.mxu0 %v135
    %156 = vmatprep.subr.mxu0 0.0
    %157 = vmatpush1.msra.mxu0 %v134
    %158 = vmatprep.subr.mxu0 0.0
    %159 = vmatpush1.msra.mxu0 %v133
    %160 = vmatprep.subr.mxu0 0.0
    %161 = vmatpush1.msra.mxu0 %v132
    %162 = vmatprep.subr.mxu0 0.0
    %163 = vmatpush1.msra.mxu0 %v131
    %164 = vmatprep.subr.mxu0 0.0
    %165 = vmatpush1.msra.mxu0 %v130
    %166 = vmatprep.subr.mxu0 0.0
    %167 = vmatpush1.msra.mxu0 %v129
    %168 = vmatprep.subr.mxu0 0.0
    %169 = vmatpush1.msra.mxu0 %v128
    %170 = vmatprep.subr.mxu0 0.0
    %171 = vmatpush1.msra.mxu0 %v127
    %172 = vmatprep.subr.mxu0 0.0
    %173 = vmatpush1.msra.mxu0 %v126
    %174 = vmatprep.subr.mxu0 0.0
    %175 = vmatpush2.msra.mxu0 0.0
    %176 = vmatprep.subr.mxu0 0.0
    %177 = vmatpush2.msra.mxu0 0.0
    %178 = vmatprep.subr.mxu0 0.0
    %179 = vmatpush2.msra.mxu0 0.0
    %180 = vmatprep.subr.mxu0 0.0
    %181 = vmatpush2.msra.mxu0 0.0
    %182 = vmatprep.subr.mxu0 0.0
    %183 = vmatpush2.msra.mxu0 0.0
    %184 = vmatprep.subr.mxu0 0.0
    %185 = vmatpush2.msra.mxu0 0.0
    %186 = vmatprep.subr.mxu0 0.0
    %187 = vmatpush2.msra.mxu0 0.0
    %188 = vmatprep.subr.mxu0 0.0
    %189 = vmatpush2.msra.mxu0 0.0
    %190 = vmatprep.subr.mxu0 0.0
    %191 = vmatpush2.msra.mxu0 0.0
    %192 = vmatprep.subr.mxu0 0.0
    %193 = vmatpush2.msra.mxu0 0.0
    %194 = vmatprep.subr.mxu0 0.0
    %195 = vmatpush2.msra.mxu0 0.0
    %196 = vmatprep.subr.mxu0 0.0
    %197 = vmatpush2.msra.mxu0 0.0
    %198 = vmatprep.subr.mxu0 0.0
    %199 = vmatpush2.msra.mxu0 0.0
    %200 = vmatprep.subr.mxu0 0.0
    %201 = vmatpush2.msra.mxu0 0.0
    %202 = vmatprep.subr.mxu0 0.0
    %203 = vmatpush2.msra.mxu0 0.0
    %204 = vmatprep.subr.mxu0 0.0
    %205 = vmatpush2.msra.mxu0 0.0
    %206 = vmatprep.mubr.f32.mxu0 0.0
    %207 = vmatmul.mubr.f32.gmra.mxu0 %v110
    %v208 = vpop.f32.mrf.mxu0
    %v209 = vadd.f32 0.0, %v208
    %v210 = vpop.f32.mrf.mxu0
    %211 = vmatprep.mubr.f32.mxu0 0.0
    %212 = vmatmul.mubr.f32.gmra.mxu0 %v111
    %v213 = vpop.f32.mrf.mxu0
    %v214 = vadd.f32 0.0, %v213
    %v215 = vpop.f32.mrf.mxu0
    %216 = vmatprep.mubr.f32.mxu0 0.0
    %217 = vmatmul.mubr.f32.gmra.mxu0 %v112
    %v218 = vpop.f32.mrf.mxu0
    %v219 = vadd.f32 0.0, %v218
    %v220 = vpop.f32.mrf.mxu0
    %221 = vmatprep.mubr.f32.mxu0 0.0
    %222 = vmatmul.mubr.f32.gmra.mxu0 %v113
    %v223 = vpop.f32.mrf.mxu0
    %v224 = vadd.f32 0.0, %v223
    %v225 = vpop.f32.mrf.mxu0
    %226 = vmatprep.mubr.f32.mxu0 0.0
    %227 = vmatmul.mubr.f32.gmra.mxu0 %v114
    %v228 = vpop.f32.mrf.mxu0
    %v229 = vadd.f32 0.0, %v228
    %v230 = vpop.f32.mrf.mxu0
    %231 = vmatprep.mubr.f32.mxu0 0.0
    %232 = vmatmul.mubr.f32.gmra.mxu0 %v115
    %v233 = vpop.f32.mrf.mxu0
    %v234 = vadd.f32 0.0, %v233
    %v235 = vpop.f32.mrf.mxu0
    %236 = vmatprep.mubr.f32.mxu0 0.0
    %237 = vmatmul.mubr.f32.gmra.mxu0 %v116
    %v238 = vpop.f32.mrf.mxu0
    %v239 = vadd.f32 0.0, %v238
    %v240 = vpop.f32.mrf.mxu0
    %241 = vmatprep.mubr.f32.mxu0 0.0
    %242 = vmatmul.mubr.f32.gmra.mxu0 %v117
    %v243 = vpop.f32.mrf.mxu0
    %v244 = vadd.f32 0.0, %v243
    %v245 = vpop.f32.mrf.mxu0
    %246 = vmatprep.mubr.f32.mxu0 0.0
    %247 = vmatmul.mubr.f32.gmra.mxu0 %v118
    %v248 = vpop.f32.mrf.mxu0
    %v249 = vadd.f32 0.0, %v248
    %v250 = vpop.f32.mrf.mxu0
    %251 = vmatprep.mubr.f32.mxu0 0.0
    %252 = vmatmul.mubr.f32.gmra.mxu0 %v119
    %v253 = vpop.f32.mrf.mxu0
    %v254 = vadd.f32 0.0, %v253
    %v255 = vpop.f32.mrf.mxu0
    %256 = vmatprep.mubr.f32.mxu0 0.0
    %257 = vmatmul.mubr.f32.gmra.mxu0 %v120
    %v258 = vpop.f32.mrf.mxu0
    %v259 = vadd.f32 0.0, %v258
    %v260 = vpop.f32.mrf.mxu0
    %261 = vmatprep.mubr.f32.mxu0 0.0
    %262 = vmatmul.mubr.f32.gmra.mxu0 %v121
    %v263 = vpop.f32.mrf.mxu0
    %v264 = vadd.f32 0.0, %v263
    %v265 = vpop.f32.mrf.mxu0
    %266 = vmatprep.mubr.f32.mxu0 0.0
    %267 = vmatmul.mubr.f32.gmra.mxu0 %v122
    %v268 = vpop.f32.mrf.mxu0
    %v269 = vadd.f32 0.0, %v268
    %v270 = vpop.f32.mrf.mxu0
    %271 = vmatprep.mubr.f32.mxu0 0.0
    %272 = vmatmul.mubr.f32.gmra.mxu0 %v123
    %v273 = vpop.f32.mrf.mxu0
    %v274 = vadd.f32 0.0, %v273
    %v275 = vpop.f32.mrf.mxu0
    %276 = vmatprep.mubr.f32.mxu0 0.0
    %277 = vmatmul.mubr.f32.gmra.mxu0 %v124
    %v278 = vpop.f32.mrf.mxu0
    %v279 = vadd.f32 0.0, %v278
    %v280 = vpop.f32.mrf.mxu0
    %281 = vmatprep.mubr.f32.mxu0 0.0
    %282 = vmatmul.mubr.f32.gmra.mxu0 %v125
    %v283 = vpop.f32.mrf.mxu0
    %v284 = vadd.f32 0.0, %v283
    %v285 = vpop.f32.mrf.mxu0
    %286 = vdwg.mxu0
    %287 = vst [vmem:[#allocation2] sm:$0xff] %v209
    %288 = vst [vmem:[#allocation2 + $0x8] sm:$0xff] %v214
    %289 = vst [vmem:[#allocation2 + $0x10] sm:$0xff] %v219
    %290 = vst [vmem:[#allocation2 + $0x18] sm:$0xff] %v224
    %291 = vst [vmem:[#allocation2 + $0x20] sm:$0xff] %v229
    %292 = vst [vmem:[#allocation2 + $0x28] sm:$0xff] %v234
    %293 = vst [vmem:[#allocation2 + $0x30] sm:$0xff] %v239
    %294 = vst [vmem:[#allocation2 + $0x38] sm:$0xff] %v244
    %295 = vst [vmem:[#allocation2 + $0x40] sm:$0xff] %v249
    %296 = vst [vmem:[#allocation2 + $0x48] sm:$0xff] %v254
    %297 = vst [vmem:[#allocation2 + $0x50] sm:$0xff] %v259
    %298 = vst [vmem:[#allocation2 + $0x58] sm:$0xff] %v264
    %299 = vst [vmem:[#allocation2 + $0x60] sm:$0xff] %v269
    %300 = vst [vmem:[#allocation2 + $0x68] sm:$0xff] %v274
    %301 = vst [vmem:[#allocation2 + $0x70] sm:$0xff] %v279
    %302 = vst [vmem:[#allocation2 + $0x78] sm:$0xff] %v284
    // Predicated region
    $region10: #{tpu_custom_call.1} parent=1 // pred_check
      _
    $region11: #{tpu_custom_call.1} parent=1 // pred_check_branch
      %304 = sbr.rel (0) target = $region13
    $region12: #{tpu_custom_call.1} parent=1 // pred_region
      %s306 = ssub.s32 2048, 2048
      %307 = vsyncadd [#allocation3], %s306
      %s308 = sshll.u32 [#allocation2], 4
      %s309 = int_to_ptr.vmem [resolvable:$true] %s308
      %314 = dma.vmem_to_hbm [thread:$0]  %s309, 2048, %s2, [#allocation3], 128, 128, 8
    $region13: #{tpu_custom_call.1} parent=1 // pred_fallthru
      _
    // Predicated region
    $region14: #{tpu_custom_call.1} parent=1 // pred_check
      _
    $region15: #{tpu_custom_call.1} parent=1 // pred_check_branch
      %316 = sbr.rel (0) target = $region17
    $region16: #{tpu_custom_call.1} parent=1 // pred_region
      %317 = dma.done [#allocation3], 2048
    $region17: #{tpu_custom_call.1} parent=1 // pred_fallthru
      _
    %318 = vsyncpa [#allocation3], 1

</llo_original>
